<compile_context>
chip_gen: v5e
topology: v5e:2x2
jax: 0.10.0
libtpu: 0.0.40
codegen_flags: <defaults>
</compile_context>

<pallas_src>
import functools

import jax
import jax.numpy as jnp
from jax.experimental import pallas as pl
from jax.experimental.pallas import tpu as pltpu

LANE = 128
CHUNK_PT = 512              # in-kernel pixel chunk; (Cmid, 512) f32 intermediate = 16 vregs
MAX_TILE_PT = 32768         # pixels (lane axis) per grid step, upper cap
VMEM_IO_BUDGET = 20 << 20   # target bytes for the double-buffered input+output blocks
VMEM_LIMIT_BYTES = 32 << 20 # explicit scoped-VMEM limit (safe on v5e/v6e/v7x)


def _round_up(x: int, m: int) -> int:
    return ((x + m - 1) // m) * m


def _choose_tile_pt(PT: int, B: int, Cin: int, Cout: int,
                    in_itemsize: int, out_itemsize: int) -> int:
    """Pick a lane-dense pixel tile that fits the VMEM budget."""
    # Double-buffered input + output blocks are the big VMEM residents; the
    # (Cmid, CHUNK_PT) intermediate lives in vregs, not VMEM.
    per_pixel = 2 * Cin * in_itemsize + 2 * Cout * out_itemsize
    tile = VMEM_IO_BUDGET // max(per_pixel, 1)
    tile = max(CHUNK_PT, (tile // CHUNK_PT) * CHUNK_PT)
    tile = min(tile, MAX_TILE_PT)
    # Never bigger than the (chunk-rounded) pixel count; last block may be partial.
    tile = min(tile, _round_up(PT, CHUNK_PT))
    # v7x has 2 TensorCores: with a single batch keep >= 2 parallel grid steps.
    if B == 1 and PT > CHUNK_PT:
        tile = min(tile, _round_up(pl.cdiv(PT, 2), CHUNK_PT))
    return tile


def _embed_kernel(x_ref, w1_ref, w2_ref, o_ref):
    # x_ref : (1, Cin,  TILE_PT)   channels on sublanes, pixels on lanes
    # w1_ref: (Cmid, Cin)          conv1 weight (out, in) -- full block, resident
    # w2_ref: (Cout, Cmid)         conv2 weight (out, in) -- full block, resident
    # o_ref : (1, Cout, TILE_PT)
    w1 = w1_ref[...]
    w2 = w2_ref[...]
    tile_pt = o_ref.shape[-1]           # static; multiple of CHUNK_PT by construction
    # Statically-unrolled chunk loop: static slice offsets, intermediate h stays
    # in vregs (no VMEM round-trip for the (Cmid, TILE_PT) temp).
    for c in range(tile_pt // CHUNK_PT):
        i = c * CHUNK_PT
        x = x_ref[0, :, pl.ds(i, CHUNK_PT)]                              # (Cin, CHUNK)
        h = jnp.maximum(jnp.dot(w1, x, preferred_element_type=jnp.float32), 0.0)
        o = jnp.maximum(jnp.dot(w2, h, preferred_element_type=jnp.float32), 0.0)
        o_ref[0, :, pl.ds(i, CHUNK_PT)] = o.astype(o_ref.dtype)


@functools.partial(jax.jit, static_argnames=("out_dtype",))
def embed_forward(x_nchw, w1, w2, *, out_dtype=None):
    """embed forward (norm=False): relu(conv1x1_2(relu(conv1x1_1(x)))).

    x_nchw: (B, Cin, P, T)
    w1    : (Cmid, Cin)  -- Conv2d weight (out, in, 1, 1) squeezed
    w2    : (Cout, Cmid)
    out_dtype: output dtype (default: x dtype). Pass jnp.bfloat16 to halve the
               dominant output HBM traffic; compute/ReLU stay in f32, cast at store.
    """
    B, Cin, P, T = x_nchw.shape
    Cmid = w1.shape[0]
    Cout = w2.shape[0]
    PT = P * T
    out_dtype = x_nchw.dtype if out_dtype is None else jnp.dtype(out_dtype)

    # norm=False -> identity.
    # TODO(synk): norm=True (BatchNorm1d over Cin*num_point) path not implemented.

    # NCHW-native: (B, Cin, P, T) -> (B, Cin, P*T) is a free view (no transpose).
    x_flat = x_nchw.reshape(B, Cin, PT)

    # No wrapper-side padding / output slicing: the trailing tile is a partial
    # block; Pallas writes back only the in-bounds lanes, OOB lanes only feed FP ops.
    in_itemsize = jnp.dtype(x_nchw.dtype).itemsize
    out_itemsize = jnp.dtype(out_dtype).itemsize
    tile_pt = _choose_tile_pt(PT, B, Cin, Cout, in_itemsize, out_itemsize)
    n_tiles = pl.cdiv(PT, tile_pt)

    flops = 2 * B * PT * (Cin * Cmid + Cmid * Cout)
    bytes_accessed = (B * Cin * PT * in_itemsize
                      + B * Cout * PT * out_itemsize
                      + w1.size * jnp.dtype(w1.dtype).itemsize
                      + w2.size * jnp.dtype(w2.dtype).itemsize)

    out_flat = pl.pallas_call(
        _embed_kernel,
        out_shape=jax.ShapeDtypeStruct((B, Cout, PT), out_dtype),
        grid_spec=pltpu.PrefetchScalarGridSpec(
            num_scalar_prefetch=0,
            grid=(B, n_tiles),
            in_specs=[
                pl.BlockSpec((1, Cin, tile_pt), lambda b, j: (b, 0, j)),
                pl.BlockSpec((Cmid, Cin), lambda b, j: (0, 0)),
                pl.BlockSpec((Cout, Cmid), lambda b, j: (0, 0)),
            ],
            out_specs=pl.BlockSpec((1, Cout, tile_pt), lambda b, j: (b, 0, j)),
        ),
        compiler_params=pltpu.CompilerParams(
            dimension_semantics=("parallel", "parallel"),
            vmem_limit_bytes=VMEM_LIMIT_BYTES),
        cost_estimate=pl.CostEstimate(
            flops=flops, transcendentals=0, bytes_accessed=bytes_accessed),
    )(x_flat, w1, w2)

    return out_flat.reshape(B, Cout, P, T)


def _reference(x_nchw, w1, w2):
    h = jnp.einsum("bcpt,mc->bmpt", x_nchw, w1)
    h = jnp.maximum(h, 0.0)
    o = jnp.einsum("bmpt,om->bopt", h, w2)
    return jnp.maximum(o, 0.0)


if __name__ == "__main__":
    # embed(in_channels=4, out_channels=64, inter_channels=32, num_point=25,
    #       norm=False, bias=False) applied to x of shape (B, Cin, num_point, step).
    B, Cin, P, T = 2, 4, 25, 16
    Cmid, Cout = 32, 64

    key = jax.random.PRNGKey(0)
    kx, k1, k2 = jax.random.split(key, 3)

    x = jax.random.normal(kx, (B, Cin, P, T), dtype=jnp.float32)
    # Conv2d weights are (out, in, 1, 1); stored here squeezed as (out, in)
    # with a deterministic Kaiming-like scale.
    w1 = jax.random.normal(k1, (Cmid, Cin), dtype=jnp.float32) * (1.0 / Cin) ** 0.5
    w2 = jax.random.normal(k2, (Cout, Cmid), dtype=jnp.float32) * (1.0 / Cmid) ** 0.5

    out = jax.block_until_ready(embed_forward(x, w1, w2))

    ref = _reference(x, w1, w2)
    assert out.shape == (B, Cout, P, T), out.shape
    assert jnp.allclose(out, ref, atol=1e-5, rtol=1e-5), "mismatch vs reference"

    print("KERNEL_OK")
</pallas_src>

<mosaic_0001>
module attributes {stable_mosaic.version = 11 : i64} {
  func.func @_embed_kernel(%arg0: i32, %arg1: i32, %arg2: memref<1x4x512xf32, #tpu.memory_space<vmem>>, %arg3: memref<32x4xf32, #tpu.memory_space<vmem>>, %arg4: memref<64x32xf32, #tpu.memory_space<vmem>>, %arg5: memref<1x64x512xf32, #tpu.memory_space<vmem>>) attributes {dimension_semantics = [#tpu.dimension_semantics<parallel>, #tpu.dimension_semantics<parallel>], iteration_bounds = array<i64: 2, 1>, scalar_prefetch = 0 : i64, scratch_operands = 0 : i64, tpu.core_type = #tpu.core_type<tc>, window_params = [{transform_indices = @transform_0, window_bounds = array<i64: 1, 4, 512>}, {pipeline_mode = #tpu.pipeline_mode<synchronous>, transform_indices = @transform_1, window_bounds = array<i64: 32, 4>}, {pipeline_mode = #tpu.pipeline_mode<synchronous>, transform_indices = @transform_2, window_bounds = array<i64: 64, 32>}, {transform_indices = @transform_3, window_bounds = array<i64: 1, 64, 512>}]} {
    %c0 = arith.constant 0 : index
    %c0_0 = arith.constant 0 : index
    %0 = vector.load %arg3[%c0, %c0_0] : memref<32x4xf32, #tpu.memory_space<vmem>>, vector<32x4xf32>
    %c0_1 = arith.constant 0 : index
    %c0_2 = arith.constant 0 : index
    %1 = vector.load %arg4[%c0_1, %c0_2] : memref<64x32xf32, #tpu.memory_space<vmem>>, vector<64x32xf32>
    %c0_3 = arith.constant 0 : index
    %c0_4 = arith.constant 0 : index
    %c0_5 = arith.constant 0 : index
    %2 = vector.load %arg2[%c0_3, %c0_4, %c0_5] : memref<1x4x512xf32, #tpu.memory_space<vmem>>, vector<1x4x512xf32>
    %3 = vector.shape_cast %2 : vector<1x4x512xf32> to vector<4x512xf32>
    %cst = arith.constant dense<0.000000e+00> : vector<32x512xf32>
    %4 = tpu.matmul %0, %3, %cst {dimension_numbers = #tpu.dot_dimension_numbers<[1], [0], [0], [1], [0, 0, 1, 1], [], []>} : vector<32x4xf32>, vector<4x512xf32>, vector<32x512xf32> -> vector<32x512xf32>
    %cst_6 = arith.constant 0.000000e+00 : f32
    %5 = vector.broadcast %cst_6 : f32 to vector<32x512xf32>
    %6 = arith.maximumf %4, %5 : vector<32x512xf32>
    %cst_7 = arith.constant dense<0.000000e+00> : vector<64x512xf32>
    %7 = tpu.matmul %1, %6, %cst_7 {dimension_numbers = #tpu.dot_dimension_numbers<[1], [0], [0], [1], [0, 0, 1, 1], [], []>} : vector<64x32xf32>, vector<32x512xf32>, vector<64x512xf32> -> vector<64x512xf32>
    %cst_8 = arith.constant 0.000000e+00 : f32
    %8 = vector.broadcast %cst_8 : f32 to vector<64x512xf32>
    %9 = arith.maximumf %7, %8 : vector<64x512xf32>
    %c0_9 = arith.constant 0 : index
    %c0_10 = arith.constant 0 : index
    %c0_11 = arith.constant 0 : index
    %10 = vector.load %arg5[%c0_9, %c0_10, %c0_11] : memref<1x64x512xf32, #tpu.memory_space<vmem>>, vector<1x64x512xf32>
    %11 = vector.shape_cast %10 : vector<1x64x512xf32> to vector<64x512xf32>
    %12 = vector.shape_cast %9 : vector<64x512xf32> to vector<1x64x512xf32>
    tpu.vector_store %arg5[%c0_9, %c0_10, %c0_11], %12 {strides = array<i32>} : memref<1x64x512xf32, #tpu.memory_space<vmem>>, vector<1x64x512xf32>,
    return
  }
  func.func @transform_0(%arg0: i32, %arg1: i32) -> (i32, i32, i32) {
    %c0_i32 = arith.constant 0 : i32
    %c0_i32_0 = arith.constant 0 : i32
    return %arg0, %c0_i32, %arg1 : i32, i32, i32
  }
  func.func @transform_1(%arg0: i32, %arg1: i32) -> (i32, i32) {
    %c0_i32 = arith.constant 0 : i32
    %c0_i32_0 = arith.constant 0 : i32
    %c0_i32_1 = arith.constant 0 : i32
    return %c0_i32, %c0_i32_0 : i32, i32
  }
  func.func @transform_2(%arg0: i32, %arg1: i32) -> (i32, i32) {
    %c0_i32 = arith.constant 0 : i32
    %c0_i32_0 = arith.constant 0 : i32
    %c0_i32_1 = arith.constant 0 : i32
    return %c0_i32, %c0_i32_0 : i32, i32
  }
  func.func @transform_3(%arg0: i32, %arg1: i32) -> (i32, i32, i32) {
    %c0_i32 = arith.constant 0 : i32
    %c0_i32_0 = arith.constant 0 : i32
    return %arg0, %c0_i32, %arg1 : i32, i32, i32
  }
}

</mosaic_0001>

<llo_original>
// kernel: embed_forward.1
$region0: #{embed_forward.1}
  #allocation0 [shape = 'u32[]', space=smem, size = 0x4, offset = 0x4, fixed_abs, tag = 'smem constant byte address 0x4 - core index']
  #allocation1 [shape = 'u32[72,128]{1,0:T(1,128)}', space=vmem, size = 0x9000, scoped, tag = 'internal scratch']
  %s0 = inlined_call_operand.vmem [shape: f32[2,4,400], index: 0, kind: input, shape index: {}]
  %s1 = inlined_call_operand.vmem [shape: f32[32,4], index: 1, kind: input, shape index: {}]
  %s2 = inlined_call_operand.vmem [shape: f32[64,32], index: 2, kind: input, shape index: {}]
  %s3 = inlined_call_operand.vmem [shape: f32[2,64,400], index: 3, kind: output, shape index: {}]
  %s4 = sld [smem:[#allocation0]]
  $region45: #{embed_forward.1} parent=0
    _
  %s6 = ssub.s32 1, %s4
  %s7 = scalar_select 0, %s6, %s4
  loop: start=0, step=1, limit=4
  $region2: #{embed_forward.1} parent=0 // loop_pre_header
    _
  $region3: #{embed_forward.1} parent=0 // loop_header
    %s9 = sphi 0, %s13
    %p10 = scmp.ge.s32.totalorder %s9, 4
    %s16 = sphi 0, %s28
    %s17 = sphi 0, %s24
    %s18 = sphi 0, %s16
    %s19 = sphi 0, %s17
    %s20 = sphi 0, %s18
    %s21 = sphi 0, %s19
    %s33 = sphi 0, %s35
    %s36 = sphi 0, %s33
    %s37 = sphi 0, %s36
    %s53 = sphi 0, %s37
    %s57 = sphi 0, %s57
    %s59 = sphi 0, %s57
    %s60 = sphi 0, %s59
    %s74 = sphi 0, %s60
    %s78 = sphi 0, %s78
    %s80 = sphi 0, %s78
    %s81 = sphi 0, %s80
    %s95 = sphi 0, %s81
    %s103 = sphi 0, %s105
    %s106 = sphi 0, %s103
    %s107 = sphi 0, %s106
    %s123 = sphi 0, %s107
  $region4: #{embed_forward.1} parent=0 // loop_header_branch
    %12 = sbr.rel (%p10) target = $region8
  $region5: #{embed_forward.1} parent=0 // loop_body
    %s14 = ssub.s32 %s9, 1
    %s15 = ssub.s32 %s9, 2
    %s22 = sadd.s32 1, %s17
    %p23 = scmp.ge.s32.totalorder %s22, 1
    %s24 = scalar_select %p23, 0, %s22
    %s25 = sadd.s32 1, %s16
    %s26 = scalar_select %p23, %s25, %s16
    %p27 = scmp.ge.s32.totalorder %s26, 2
    %s28 = scalar_select %p27, 0, %s26
    %s29 = ssub.s32 %s16, %s28
    %s30 = ssub.s32 %s17, %s24
    %s31 = sor.u32 %s29, %s30
    %p32 = scmp.eq.s32.totalorder %s31, 0
    %s34 = sadd.s32 %s33, 1
    %s35 = scalar_select %p32, %s33, %s34
    %p38 = pneg %p32
    %p39 = scmp.eq.s32.totalorder %s9, 1
    %p40 = por %p38, %p39
    %p41 = scmp.ne.s32.totalorder %s33, %s36
    %p42 = scmp.eq.s32.totalorder %s9, 0
    %p43 = por %p41, %p42
    %p44 = scmp.ne.s32.totalorder %s33, %s36
    %p45 = scmp.eq.s32.totalorder %s14, 1
    %p46 = por %p44, %p45
    %p47 = scmp.ne.s32.totalorder %s36, %s37
    %p48 = scmp.eq.s32.totalorder %s14, 0
    %p49 = por %p47, %p48
    %p50 = scmp.ne.s32.totalorder %s36, %s37
    %p51 = scmp.eq.s32.totalorder %s15, 1
    %p52 = por %p50, %p51
    %p54 = scmp.ne.s32.totalorder %s37, %s53
    %p55 = scmp.eq.s32.totalorder %s15, 0
    %p56 = por %p54, %p55
    %s58 = sadd.s32 %s57, 1
    %p61 = scmp.eq.s32.totalorder %s9, 1
    %p62 = scmp.ne.s32.totalorder %s57, %s59
    %p63 = scmp.eq.s32.totalorder %s9, 0
    %p64 = por %p62, %p63
    %p65 = scmp.ne.s32.totalorder %s57, %s59
    %p66 = scmp.eq.s32.totalorder %s14, 1
    %p67 = por %p65, %p66
    %p68 = scmp.ne.s32.totalorder %s59, %s60
    %p69 = scmp.eq.s32.totalorder %s14, 0
    %p70 = por %p68, %p69
    %p71 = scmp.ne.s32.totalorder %s59, %s60
    %p72 = scmp.eq.s32.totalorder %s15, 1
    %p73 = por %p71, %p72
    %p75 = scmp.ne.s32.totalorder %s60, %s74
    %p76 = scmp.eq.s32.totalorder %s15, 0
    %p77 = por %p75, %p76
    %s79 = sadd.s32 %s78, 1
    %p82 = scmp.eq.s32.totalorder %s9, 1
    %p83 = scmp.ne.s32.totalorder %s78, %s80
    %p84 = scmp.eq.s32.totalorder %s9, 0
    %p85 = por %p83, %p84
    %p86 = scmp.ne.s32.totalorder %s78, %s80
    %p87 = scmp.eq.s32.totalorder %s14, 1
    %p88 = por %p86, %p87
    %p89 = scmp.ne.s32.totalorder %s80, %s81
    %p90 = scmp.eq.s32.totalorder %s14, 0
    %p91 = por %p89, %p90
    %p92 = scmp.ne.s32.totalorder %s80, %s81
    %p93 = scmp.eq.s32.totalorder %s15, 1
    %p94 = por %p92, %p93
    %p96 = scmp.ne.s32.totalorder %s81, %s95
    %p97 = scmp.eq.s32.totalorder %s15, 0
    %p98 = por %p96, %p97
    %s99 = ssub.s32 %s16, %s28
    %s100 = ssub.s32 %s17, %s24
    %s101 = sor.u32 %s99, %s100
    %p102 = scmp.eq.s32.totalorder %s101, 0
    %s104 = sadd.s32 %s103, 1
    %s105 = scalar_select %p102, %s103, %s104
    %p108 = pneg %p102
    %p109 = scmp.eq.s32.totalorder %s9, 1
    %p110 = por %p108, %p109
    %p111 = scmp.ne.s32.totalorder %s103, %s106
    %p112 = scmp.eq.s32.totalorder %s9, 0
    %p113 = por %p111, %p112
    %p114 = scmp.ne.s32.totalorder %s103, %s106
    %p115 = scmp.eq.s32.totalorder %s14, 1
    %p116 = por %p114, %p115
    %p117 = scmp.ne.s32.totalorder %s106, %s107
    %p118 = scmp.eq.s32.totalorder %s14, 0
    %p119 = por %p117, %p118
    %p120 = scmp.ne.s32.totalorder %s106, %s107
    %p121 = scmp.eq.s32.totalorder %s15, 1
    %p122 = por %p120, %p121
    %p124 = scmp.ne.s32.totalorder %s107, %s123
    %p125 = scmp.eq.s32.totalorder %s15, 0
    %p126 = por %p124, %p125
    %p127 = scmp.le.s32.totalorder 1, %s9
    %p128 = scmp.lt.s32.totalorder %s9, 3
    %p129 = pnand %p127, %p128
    %p130 = pneg %p129
    // Predicated region
    $region9: #{embed_forward.1} parent=5 // pred_check
      _
    $region10: #{embed_forward.1} parent=5 // pred_check_branch
      %132 = sbr.rel (%p129) target = $region12
    $region11: #{embed_forward.1} parent=5 // pred_region
      %s133 = ssub.s32 %s9, 1
      // Predicated region
      $region13: #{embed_forward.1} parent=11 // pred_check
        %p134 = pneg %p70
      $region14: #{embed_forward.1} parent=11 // pred_check_branch
        %136 = sbr.rel (%p134) target = $region16
      $region15: #{embed_forward.1} parent=11 // pred_region
        _
      $region16: #{embed_forward.1} parent=11 // pred_fallthru
        _
      // Predicated region
      $region17: #{embed_forward.1} parent=11 // pred_check
        %p137 = pneg %p91
      $region18: #{embed_forward.1} parent=11 // pred_check_branch
        %139 = sbr.rel (%p137) target = $region20
      $region19: #{embed_forward.1} parent=11 // pred_region
        _
      $region20: #{embed_forward.1} parent=11 // pred_fallthru
        _
    $region12: #{embed_forward.1} parent=5 // pred_fallthru
      _
    %p140 = scmp.lt.s32.totalorder %s9, 2
    // Predicated region
    $region21: #{embed_forward.1} parent=5 // pred_check
      %p141 = pneg %p140
    $region22: #{embed_forward.1} parent=5 // pred_check_branch
      %143 = sbr.rel (%p141) target = $region24
    $region23: #{embed_forward.1} parent=5 // pred_region
      // Predicated region
      $region25: #{embed_forward.1} parent=23 // pred_check
        %p144 = pneg %p43
      $region26: #{embed_forward.1} parent=23 // pred_check_branch
        %146 = sbr.rel (%p144) target = $region28
      $region27: #{embed_forward.1} parent=23 // pred_region
        %s147 = smul.u32 4, %s17
        %p148 = scmp.lt.s32.totalorder %s16, 1
        %s149 = scalar_select %p148, %s16, 1
        %p150 = scmp.lt.s32.totalorder %s147, 3
        %s151 = scalar_select %p150, %s147, 3
        %s152 = smul.addr %s149, 4
        %s153 = sadd.s32 %s151, %s152
        %s154 = smul.addr %s153, 4
        %s155 = scalar_lea.vmem %s0, %s154
        %s156 = smul.u32 4, %s17
      $region28: #{embed_forward.1} parent=23 // pred_fallthru
        _
    $region24: #{embed_forward.1} parent=5 // pred_fallthru
      _
    %p157 = scmp.le.s32.totalorder 1, %s9
    %p158 = scmp.lt.s32.totalorder %s9, 3
    %p159 = pnand %p157, %p158
    %p160 = pneg %p159
    // Predicated region
    $region29: #{embed_forward.1} parent=5 // pred_check
      _
    $region30: #{embed_forward.1} parent=5 // pred_check_branch
      %162 = sbr.rel (%p159) target = $region32
    $region31: #{embed_forward.1} parent=5 // pred_region
      %s163 = ssub.s32 %s9, 1
      %s164 = smul.u32 4, %s19
      %p165 = scmp.lt.s32.totalorder %s18, 1
      %s166 = scalar_select %p165, %s18, 1
      %p167 = scmp.lt.s32.totalorder %s164, 3
      %s168 = scalar_select %p167, %s164, 3
      %s169 = smul.addr %s166, 4
      %s170 = sadd.s32 %s168, %s169
      %s171 = smul.addr %s170, 4
      %s172 = scalar_lea.vmem %s0, %s171
      %p173 = pneg %p49
      %p174 = pneg %p46
      %p175 = pneg %p70
      %p176 = pneg %p67
      %p177 = pneg %p91
      %p178 = pneg %p88
      %p179 = pneg %p119
      %p180 = pneg %p116
      %s181 = smul.u32 4, %s19
      %p182 = scmp.lt.s32.totalorder %s18, 1
      %s183 = scalar_select %p182, %s18, 1
      %p184 = scmp.lt.s32.totalorder %s181, 3
      %s185 = scalar_select %p184, %s181, 3
      %s186 = smul.addr %s183, 32
      %s187 = sadd.s32 %s185, %s186
      %s188 = smul.addr %s187, 8
      %s189 = scalar_lea.vmem %s3, %s188
      %s190 = smul.u32 4, %s19
      %p191 = scmp.lt.s32.totalorder %s18, 1
      %s192 = scalar_select %p191, %s18, 1
      %p193 = scmp.lt.s32.totalorder %s190, 3
      %s194 = scalar_select %p193, %s190, 3
      %s195 = smul.addr %s192, 4
      %s196 = sadd.s32 %s194, %s195
      %s197 = smul.addr %s196, 4
      %s198 = scalar_lea.vmem %s0, %s197
      %s199 = smul.u32 4, %s19
      %s200 = smul.u32 4, %s19
      %p201 = scmp.lt.s32.totalorder %s18, 1
      %s202 = scalar_select %p201, %s18, 1
      %p203 = scmp.lt.s32.totalorder %s200, 3
      %s204 = scalar_select %p203, %s200, 3
      %s205 = smul.addr %s202, 32
      %s206 = sadd.s32 %s204, %s205
      %s207 = smul.addr %s206, 8
      %s208 = scalar_lea.vmem %s3, %s207
      %s209 = smul.u32 4, %s19
      %v210 = vld [vmem:[%s1] sm:$0xff]
      %v211 = vld [vmem:[%s1 + $0x8] sm:$0xff]
      %v212 = vld [vmem:[%s1 + $0x10] sm:$0xff]
      %v213 = vld [vmem:[%s1 + $0x18] sm:$0xff]
      %v214 = vld [vmem:[%s2] sm:$0xff]
      %v215 = vld [vmem:[%s2 + $0x8] sm:$0xff]
      %v216 = vld [vmem:[%s2 + $0x10] sm:$0xff]
      %v217 = vld [vmem:[%s2 + $0x18] sm:$0xff]
      %v218 = vld [vmem:[%s2 + $0x20] sm:$0xff]
      %v219 = vld [vmem:[%s2 + $0x28] sm:$0xff]
      %v220 = vld [vmem:[%s2 + $0x30] sm:$0xff]
      %v221 = vld [vmem:[%s2 + $0x38] sm:$0xff]
      %v222 = vld [vmem:[%s198] sm:$0xff]
      %v223 = vld [vmem:[%s198 + $0x8] sm:$0xff]
      %226 = vst [vmem:[#allocation1] ss:$2 sm:$0xff] %v222
      %s227 = scalar_lea.vmem [#allocation1], 16
      %228 = vst [vmem:[%s227] ss:$2 sm:$0xff] %v223
      %v229 = vld.sshfl [vmem:[#allocation1] sm:$0xff pattern:$0x75316420]
      %v230 = vld.sshfl [vmem:[#allocation1 + $0x8] sm:$0xff pattern:$0x75316420]
      %v231 = vld.sshfl [vmem:[#allocation1 + $0x10] sm:$0xff pattern:$0x75316420]
      %v232 = vld.sshfl [vmem:[#allocation1 + $0x18] sm:$0xff pattern:$0x75316420]
      %vm233 = vcmask 31744
      %v235 = vsel %vm233, %v210, 0
      %v238 = vsel %vm233, %v211, 0
      %v241 = vsel %vm233, %v212, 0
      %v244 = vsel %vm233, %v213, 0
      %vm246 = vcmask 1043456
      %v247 = vsel %vm246, %v229, 0
      %v249 = vsel %vm246, %v230, 0
      %v251 = vsel %vm246, %v231, 0
      %v253 = vsel %vm246, %v232, 0
      %255 = vmatpush.msra.mxu0 0.0
      %256 = vmatpush.msra.mxu0 0.0
      %257 = vmatpush.msra.mxu0 0.0
      %258 = vmatpush.msra.mxu0 0.0
      %259 = vmatpush.msra.mxu0 0.0
      %260 = vmatpush.msra.mxu0 0.0
      %261 = vmatpush.msra.mxu0 0.0
      %262 = vmatpush.msra.mxu0 0.0
      %263 = vmatpush.msra.mxu0 0.0
      %264 = vmatpush.msra.mxu0 0.0
      %265 = vmatpush.msra.mxu0 0.0
      %266 = vmatpush.msra.mxu0 0.0
      %267 = vmatpush.msra.mxu0 0.0
      %268 = vmatpush.msra.mxu0 0.0
      %269 = vmatpush.msra.mxu0 0.0
      %270 = vmatpush.msra.mxu0 %v247
      %271 = vmatmul.f32.gmra.mxu0 %v235
      %v272 = vpop.f32.mrf.mxu0
      %v273 = vadd.f32 0.0, %v272
      %274 = vmatmul.f32.gmra.mxu0 %v238
      %v275 = vpop.f32.mrf.mxu0
      %v276 = vadd.f32 0.0, %v275
      %277 = vmatmul.f32.gmra.mxu0 %v241
      %v278 = vpop.f32.mrf.mxu0
      %v279 = vadd.f32 0.0, %v278
      %280 = vmatmul.f32.gmra.mxu0 %v244
      %v281 = vpop.f32.mrf.mxu0
      %v282 = vadd.f32 0.0, %v281
      %283 = vdwg.mxu0
      %284 = vmatpush.msra.mxu0 0.0
      %285 = vmatpush.msra.mxu0 0.0
      %286 = vmatpush.msra.mxu0 0.0
      %287 = vmatpush.msra.mxu0 0.0
      %288 = vmatpush.msra.mxu0 0.0
      %289 = vmatpush.msra.mxu0 0.0
      %290 = vmatpush.msra.mxu0 0.0
      %291 = vmatpush.msra.mxu0 0.0
      %292 = vmatpush.msra.mxu0 0.0
      %293 = vmatpush.msra.mxu0 0.0
      %294 = vmatpush.msra.mxu0 0.0
      %295 = vmatpush.msra.mxu0 0.0
      %296 = vmatpush.msra.mxu0 0.0
      %297 = vmatpush.msra.mxu0 0.0
      %298 = vmatpush.msra.mxu0 0.0
      %299 = vmatpush.msra.mxu0 %v249
      %300 = vmatmul.f32.gmra.mxu0 %v235
      %v301 = vpop.f32.mrf.mxu0
      %v302 = vadd.f32 0.0, %v301
      %303 = vmatmul.f32.gmra.mxu0 %v238
      %v304 = vpop.f32.mrf.mxu0
      %v305 = vadd.f32 0.0, %v304
      %306 = vmatmul.f32.gmra.mxu0 %v241
      %v307 = vpop.f32.mrf.mxu0
      %v308 = vadd.f32 0.0, %v307
      %309 = vmatmul.f32.gmra.mxu0 %v244
      %v310 = vpop.f32.mrf.mxu0
      %v311 = vadd.f32 0.0, %v310
      %312 = vdwg.mxu0
      %313 = vmatpush.msra.mxu0 0.0
      %314 = vmatpush.msra.mxu0 0.0
      %315 = vmatpush.msra.mxu0 0.0
      %316 = vmatpush.msra.mxu0 0.0
      %317 = vmatpush.msra.mxu0 0.0
      %318 = vmatpush.msra.mxu0 0.0
      %319 = vmatpush.msra.mxu0 0.0
      %320 = vmatpush.msra.mxu0 0.0
      %321 = vmatpush.msra.mxu0 0.0
      %322 = vmatpush.msra.mxu0 0.0
      %323 = vmatpush.msra.mxu0 0.0
      %324 = vmatpush.msra.mxu0 0.0
      %325 = vmatpush.msra.mxu0 0.0
      %326 = vmatpush.msra.mxu0 0.0
      %327 = vmatpush.msra.mxu0 0.0
      %328 = vmatpush.msra.mxu0 %v251
      %329 = vmatmul.f32.gmra.mxu0 %v235
      %v330 = vpop.f32.mrf.mxu0
      %v331 = vadd.f32 0.0, %v330
      %332 = vmatmul.f32.gmra.mxu0 %v238
      %v333 = vpop.f32.mrf.mxu0
      %v334 = vadd.f32 0.0, %v333
      %335 = vmatmul.f32.gmra.mxu0 %v241
      %v336 = vpop.f32.mrf.mxu0
      %v337 = vadd.f32 0.0, %v336
      %338 = vmatmul.f32.gmra.mxu0 %v244
      %v339 = vpop.f32.mrf.mxu0
      %v340 = vadd.f32 0.0, %v339
      %341 = vdwg.mxu0
      %342 = vmatpush.msra.mxu0 0.0
      %343 = vmatpush.msra.mxu0 0.0
      %344 = vmatpush.msra.mxu0 0.0
      %345 = vmatpush.msra.mxu0 0.0
      %346 = vmatpush.msra.mxu0 0.0
      %347 = vmatpush.msra.mxu0 0.0
      %348 = vmatpush.msra.mxu0 0.0
      %349 = vmatpush.msra.mxu0 0.0
      %350 = vmatpush.msra.mxu0 0.0
      %351 = vmatpush.msra.mxu0 0.0
      %352 = vmatpush.msra.mxu0 0.0
      %353 = vmatpush.msra.mxu0 0.0
      %354 = vmatpush.msra.mxu0 0.0
      %355 = vmatpush.msra.mxu0 0.0
      %356 = vmatpush.msra.mxu0 0.0
      %357 = vmatpush.msra.mxu0 %v253
      %358 = vmatmul.f32.gmra.mxu0 %v235
      %v359 = vpop.f32.mrf.mxu0
      %v360 = vadd.f32 0.0, %v359
      %361 = vmatmul.f32.gmra.mxu0 %v238
      %v362 = vpop.f32.mrf.mxu0
      %v363 = vadd.f32 0.0, %v362
      %364 = vmatmul.f32.gmra.mxu0 %v241
      %v365 = vpop.f32.mrf.mxu0
      %v366 = vadd.f32 0.0, %v365
      %367 = vmatmul.f32.gmra.mxu0 %v244
      %v368 = vpop.f32.mrf.mxu0
      %v369 = vadd.f32 0.0, %v368
      %370 = vdwg.mxu0
      %v371 = vmax.f32 %v273, 0.0
      %v372 = vmax.f32 %v302, 0.0
      %v373 = vmax.f32 %v331, 0.0
      %v374 = vmax.f32 %v360, 0.0
      %v375 = vmax.f32 %v276, 0.0
      %v376 = vmax.f32 %v305, 0.0
      %v377 = vmax.f32 %v334, 0.0
      %v378 = vmax.f32 %v363, 0.0
      %v379 = vmax.f32 %v279, 0.0
      %v380 = vmax.f32 %v308, 0.0
      %v381 = vmax.f32 %v337, 0.0
      %v382 = vmax.f32 %v366, 0.0
      %v383 = vmax.f32 %v282, 0.0
      %v384 = vmax.f32 %v311, 0.0
      %v385 = vmax.f32 %v340, 0.0
      %v386 = vmax.f32 %v369, 0.0
      %vm387 = vcmask 261120
      %v389 = vsel %vm387, %v214, 0
      %v392 = vsel %vm387, %v215, 0
      %v395 = vsel %vm387, %v216, 0
      %v398 = vsel %vm387, %v217, 0
      %v401 = vsel %vm387, %v218, 0
      %v404 = vsel %vm387, %v219, 0
      %v407 = vsel %vm387, %v220, 0
      %v410 = vsel %vm387, %v221, 0
      %412 = vmatpush.msra.mxu0 0.0
      %413 = vmatpush.msra.mxu0 0.0
      %414 = vmatpush.msra.mxu0 0.0
      %415 = vmatpush.msra.mxu0 0.0
      %416 = vmatpush.msra.mxu0 0.0
      %417 = vmatpush.msra.mxu0 0.0
      %418 = vmatpush.msra.mxu0 0.0
      %419 = vmatpush.msra.mxu0 0.0
      %420 = vmatpush.msra.mxu0 0.0
      %421 = vmatpush.msra.mxu0 0.0
      %422 = vmatpush.msra.mxu0 0.0
      %423 = vmatpush.msra.mxu0 0.0
      %424 = vmatpush.msra.mxu0 %v383
      %425 = vmatpush.msra.mxu0 %v379
      %426 = vmatpush.msra.mxu0 %v375
      %427 = vmatpush.msra.mxu0 %v371
      %428 = vmatmul.f32.gmra.mxu0 %v389
      %v429 = vpop.f32.mrf.mxu0
      %v430 = vadd.f32 0.0, %v429
      %431 = vmatmul.f32.gmra.mxu0 %v392
      %v432 = vpop.f32.mrf.mxu0
      %v433 = vadd.f32 0.0, %v432
      %434 = vmatmul.f32.gmra.mxu0 %v395
      %v435 = vpop.f32.mrf.mxu0
      %v436 = vadd.f32 0.0, %v435
      %437 = vmatmul.f32.gmra.mxu0 %v398
      %v438 = vpop.f32.mrf.mxu0
      %v439 = vadd.f32 0.0, %v438
      %440 = vmatmul.f32.gmra.mxu0 %v401
      %v441 = vpop.f32.mrf.mxu0
      %v442 = vadd.f32 0.0, %v441
      %443 = vmatmul.f32.gmra.mxu0 %v404
      %v444 = vpop.f32.mrf.mxu0
      %v445 = vadd.f32 0.0, %v444
      %446 = vmatmul.f32.gmra.mxu0 %v407
      %v447 = vpop.f32.mrf.mxu0
      %v448 = vadd.f32 0.0, %v447
      %449 = vmatmul.f32.gmra.mxu0 %v410
      %v450 = vpop.f32.mrf.mxu0
      %v451 = vadd.f32 0.0, %v450
      %452 = vdwg.mxu0
      %453 = vmatpush.msra.mxu0 0.0
      %454 = vmatpush.msra.mxu0 0.0
      %455 = vmatpush.msra.mxu0 0.0
      %456 = vmatpush.msra.mxu0 0.0
      %457 = vmatpush.msra.mxu0 0.0
      %458 = vmatpush.msra.mxu0 0.0
      %459 = vmatpush.msra.mxu0 0.0
      %460 = vmatpush.msra.mxu0 0.0
      %461 = vmatpush.msra.mxu0 0.0
      %462 = vmatpush.msra.mxu0 0.0
      %463 = vmatpush.msra.mxu0 0.0
      %464 = vmatpush.msra.mxu0 0.0
      %465 = vmatpush.msra.mxu0 %v384
      %466 = vmatpush.msra.mxu0 %v380
      %467 = vmatpush.msra.mxu0 %v376
      %468 = vmatpush.msra.mxu0 %v372
      %469 = vmatmul.f32.gmra.mxu0 %v389
      %v470 = vpop.f32.mrf.mxu0
      %v471 = vadd.f32 0.0, %v470
      %472 = vmatmul.f32.gmra.mxu0 %v392
      %v473 = vpop.f32.mrf.mxu0
      %v474 = vadd.f32 0.0, %v473
      %475 = vmatmul.f32.gmra.mxu0 %v395
      %v476 = vpop.f32.mrf.mxu0
      %v477 = vadd.f32 0.0, %v476
      %478 = vmatmul.f32.gmra.mxu0 %v398
      %v479 = vpop.f32.mrf.mxu0
      %v480 = vadd.f32 0.0, %v479
      %481 = vmatmul.f32.gmra.mxu0 %v401
      %v482 = vpop.f32.mrf.mxu0
      %v483 = vadd.f32 0.0, %v482
      %484 = vmatmul.f32.gmra.mxu0 %v404
      %v485 = vpop.f32.mrf.mxu0
      %v486 = vadd.f32 0.0, %v485
      %487 = vmatmul.f32.gmra.mxu0 %v407
      %v488 = vpop.f32.mrf.mxu0
      %v489 = vadd.f32 0.0, %v488
      %490 = vmatmul.f32.gmra.mxu0 %v410
      %v491 = vpop.f32.mrf.mxu0
      %v492 = vadd.f32 0.0, %v491
      %493 = vdwg.mxu0
      %494 = vmatpush.msra.mxu0 0.0
      %495 = vmatpush.msra.mxu0 0.0
      %496 = vmatpush.msra.mxu0 0.0
      %497 = vmatpush.msra.mxu0 0.0
      %498 = vmatpush.msra.mxu0 0.0
      %499 = vmatpush.msra.mxu0 0.0
      %500 = vmatpush.msra.mxu0 0.0
      %501 = vmatpush.msra.mxu0 0.0
      %502 = vmatpush.msra.mxu0 0.0
      %503 = vmatpush.msra.mxu0 0.0
      %504 = vmatpush.msra.mxu0 0.0
      %505 = vmatpush.msra.mxu0 0.0
      %506 = vmatpush.msra.mxu0 %v385
      %507 = vmatpush.msra.mxu0 %v381
      %508 = vmatpush.msra.mxu0 %v377
      %509 = vmatpush.msra.mxu0 %v373
      %510 = vmatmul.f32.gmra.mxu0 %v389
      %v511 = vpop.f32.mrf.mxu0
      %v512 = vadd.f32 0.0, %v511
      %513 = vmatmul.f32.gmra.mxu0 %v392
      %v514 = vpop.f32.mrf.mxu0
      %v515 = vadd.f32 0.0, %v514
      %516 = vmatmul.f32.gmra.mxu0 %v395
      %v517 = vpop.f32.mrf.mxu0
      %v518 = vadd.f32 0.0, %v517
      %519 = vmatmul.f32.gmra.mxu0 %v398
      %v520 = vpop.f32.mrf.mxu0
      %v521 = vadd.f32 0.0, %v520
      %522 = vmatmul.f32.gmra.mxu0 %v401
      %v523 = vpop.f32.mrf.mxu0
      %v524 = vadd.f32 0.0, %v523
      %525 = vmatmul.f32.gmra.mxu0 %v404
      %v526 = vpop.f32.mrf.mxu0
      %v527 = vadd.f32 0.0, %v526
      %528 = vmatmul.f32.gmra.mxu0 %v407
      %v529 = vpop.f32.mrf.mxu0
      %v530 = vadd.f32 0.0, %v529
      %531 = vmatmul.f32.gmra.mxu0 %v410
      %v532 = vpop.f32.mrf.mxu0
      %v533 = vadd.f32 0.0, %v532
      %534 = vdwg.mxu0
      %535 = vmatpush.msra.mxu0 0.0
      %536 = vmatpush.msra.mxu0 0.0
      %537 = vmatpush.msra.mxu0 0.0
      %538 = vmatpush.msra.mxu0 0.0
      %539 = vmatpush.msra.mxu0 0.0
      %540 = vmatpush.msra.mxu0 0.0
      %541 = vmatpush.msra.mxu0 0.0
      %542 = vmatpush.msra.mxu0 0.0
      %543 = vmatpush.msra.mxu0 0.0
      %544 = vmatpush.msra.mxu0 0.0
      %545 = vmatpush.msra.mxu0 0.0
      %546 = vmatpush.msra.mxu0 0.0
      %547 = vmatpush.msra.mxu0 %v386
      %548 = vmatpush.msra.mxu0 %v382
      %549 = vmatpush.msra.mxu0 %v378
      %550 = vmatpush.msra.mxu0 %v374
      %551 = vmatmul.f32.gmra.mxu0 %v389
      %v552 = vpop.f32.mrf.mxu0
      %v553 = vadd.f32 0.0, %v552
      %554 = vmatmul.f32.gmra.mxu0 %v392
      %v555 = vpop.f32.mrf.mxu0
      %v556 = vadd.f32 0.0, %v555
      %557 = vmatmul.f32.gmra.mxu0 %v395
      %v558 = vpop.f32.mrf.mxu0
      %v559 = vadd.f32 0.0, %v558
      %560 = vmatmul.f32.gmra.mxu0 %v398
      %v561 = vpop.f32.mrf.mxu0
      %v562 = vadd.f32 0.0, %v561
      %563 = vmatmul.f32.gmra.mxu0 %v401
      %v564 = vpop.f32.mrf.mxu0
      %v565 = vadd.f32 0.0, %v564
      %566 = vmatmul.f32.gmra.mxu0 %v404
      %v567 = vpop.f32.mrf.mxu0
      %v568 = vadd.f32 0.0, %v567
      %569 = vmatmul.f32.gmra.mxu0 %v407
      %v570 = vpop.f32.mrf.mxu0
      %v571 = vadd.f32 0.0, %v570
      %572 = vmatmul.f32.gmra.mxu0 %v410
      %v573 = vpop.f32.mrf.mxu0
      %v574 = vadd.f32 0.0, %v573
      %575 = vdwg.mxu0
      %v576 = vmax.f32 %v430, 0.0
      %v577 = vmax.f32 %v471, 0.0
      %v578 = vmax.f32 %v512, 0.0
      %v579 = vmax.f32 %v553, 0.0
      %v580 = vmax.f32 %v433, 0.0
      %v581 = vmax.f32 %v474, 0.0
      %v582 = vmax.f32 %v515, 0.0
      %v583 = vmax.f32 %v556, 0.0
      %v584 = vmax.f32 %v436, 0.0
      %v585 = vmax.f32 %v477, 0.0
      %v586 = vmax.f32 %v518, 0.0
      %v587 = vmax.f32 %v559, 0.0
      %v588 = vmax.f32 %v439, 0.0
      %v589 = vmax.f32 %v480, 0.0
      %v590 = vmax.f32 %v521, 0.0
      %v591 = vmax.f32 %v562, 0.0
      %v592 = vmax.f32 %v442, 0.0
      %v593 = vmax.f32 %v483, 0.0
      %v594 = vmax.f32 %v524, 0.0
      %v595 = vmax.f32 %v565, 0.0
      %v596 = vmax.f32 %v445, 0.0
      %v597 = vmax.f32 %v486, 0.0
      %v598 = vmax.f32 %v527, 0.0
      %v599 = vmax.f32 %v568, 0.0
      %v600 = vmax.f32 %v448, 0.0
      %v601 = vmax.f32 %v489, 0.0
      %v602 = vmax.f32 %v530, 0.0
      %v603 = vmax.f32 %v571, 0.0
      %v604 = vmax.f32 %v451, 0.0
      %v605 = vmax.f32 %v492, 0.0
      %v606 = vmax.f32 %v533, 0.0
      %v607 = vmax.f32 %v574, 0.0
      %608 = vst [vmem:[%s208] sm:$0xff] %v576
      %609 = vst [vmem:[%s208 + $0x8] sm:$0xff] %v577
      %610 = vst [vmem:[%s208 + $0x10] sm:$0xff] %v578
      %611 = vst [vmem:[%s208 + $0x18] sm:$0xff] %v579
      %612 = vst [vmem:[%s208 + $0x20] sm:$0xff] %v580
      %613 = vst [vmem:[%s208 + $0x28] sm:$0xff] %v581
      %614 = vst [vmem:[%s208 + $0x30] sm:$0xff] %v582
      %615 = vst [vmem:[%s208 + $0x38] sm:$0xff] %v583
      %616 = vst [vmem:[%s208 + $0x40] sm:$0xff] %v584
      %617 = vst [vmem:[%s208 + $0x48] sm:$0xff] %v585
      %618 = vst [vmem:[%s208 + $0x50] sm:$0xff] %v586
      %619 = vst [vmem:[%s208 + $0x58] sm:$0xff] %v587
      %620 = vst [vmem:[%s208 + $0x60] sm:$0xff] %v588
      %621 = vst [vmem:[%s208 + $0x68] sm:$0xff] %v589
      %622 = vst [vmem:[%s208 + $0x70] sm:$0xff] %v590
      %623 = vst [vmem:[%s208 + $0x78] sm:$0xff] %v591
      %624 = vst [vmem:[%s208 + $0x80] sm:$0xff] %v592
      %625 = vst [vmem:[%s208 + $0x88] sm:$0xff] %v593
      %626 = vst [vmem:[%s208 + $0x90] sm:$0xff] %v594
      %627 = vst [vmem:[%s208 + $0x98] sm:$0xff] %v595
      %628 = vst [vmem:[%s208 + $0xa0] sm:$0xff] %v596
      %629 = vst [vmem:[%s208 + $0xa8] sm:$0xff] %v597
      %630 = vst [vmem:[%s208 + $0xb0] sm:$0xff] %v598
      %631 = vst [vmem:[%s208 + $0xb8] sm:$0xff] %v599
      %632 = vst [vmem:[%s208 + $0xc0] sm:$0xff] %v600
      %633 = vst [vmem:[%s208 + $0xc8] sm:$0xff] %v601
      %634 = vst [vmem:[%s208 + $0xd0] sm:$0xff] %v602
      %635 = vst [vmem:[%s208 + $0xd8] sm:$0xff] %v603
      %636 = vst [vmem:[%s208 + $0xe0] sm:$0xff] %v604
      %637 = vst [vmem:[%s208 + $0xe8] sm:$0xff] %v605
      %638 = vst [vmem:[%s208 + $0xf0] sm:$0xff] %v606
      %639 = vst [vmem:[%s208 + $0xf8] sm:$0xff] %v607
      %s640 = smul.u32 4, %s19
      %p641 = scmp.lt.s32.totalorder %s18, 1
      %s642 = scalar_select %p641, %s18, 1
      %p643 = scmp.lt.s32.totalorder %s640, 3
      %s644 = scalar_select %p643, %s640, 3
      %s645 = smul.addr %s642, 32
      %s646 = sadd.s32 %s644, %s645
      %s647 = smul.addr %s646, 8
      %s648 = scalar_lea.vmem %s3, %s647
      // Predicated region
      $region33: #{embed_forward.1} parent=31 // pred_check
        %p649 = pneg %p116
      $region34: #{embed_forward.1} parent=31 // pred_check_branch
        %651 = sbr.rel (%p649) target = $region36
      $region35: #{embed_forward.1} parent=31 // pred_region
        %s652 = smul.u32 4, %s19
      $region36: #{embed_forward.1} parent=31 // pred_fallthru
        _
    $region32: #{embed_forward.1} parent=5 // pred_fallthru
      _
    %p653 = scmp.le.s32.totalorder 2, %s9
    // Predicated region
    $region37: #{embed_forward.1} parent=5 // pred_check
      %p654 = pneg %p653
    $region38: #{embed_forward.1} parent=5 // pred_check_branch
      %656 = sbr.rel (%p654) target = $region40
    $region39: #{embed_forward.1} parent=5 // pred_region
      %s657 = ssub.s32 %s9, 2
      // Predicated region
      $region41: #{embed_forward.1} parent=39 // pred_check
        %p658 = pneg %p122
      $region42: #{embed_forward.1} parent=39 // pred_check_branch
        %660 = sbr.rel (%p658) target = $region44
      $region43: #{embed_forward.1} parent=39 // pred_region
        %s661 = smul.u32 4, %s21
        %p662 = scmp.lt.s32.totalorder %s20, 1
        %s663 = scalar_select %p662, %s20, 1
        %p664 = scmp.lt.s32.totalorder %s661, 3
        %s665 = scalar_select %p664, %s661, 3
        %s666 = smul.addr %s663, 32
        %s667 = sadd.s32 %s665, %s666
        %s668 = smul.addr %s667, 8
        %s669 = scalar_lea.vmem %s3, %s668
      $region44: #{embed_forward.1} parent=39 // pred_fallthru
        _
    $region40: #{embed_forward.1} parent=5 // pred_fallthru
      _
  $region6: #{embed_forward.1} parent=0 // loop_footer
    %s13 = sadd.s32 1, %s9
  $region7: #{embed_forward.1} parent=0 // loop_footer_branch
    %8 = sbr.rel target = $region3
  $region8: #{embed_forward.1} parent=0 // loop_exit
    _

</llo_original>
